<compile_context>
chip_gen: v7x
topology: tpu7x:2x2x1
jax: 0.10.0
libtpu: 0.0.40
codegen_flags: <defaults>
</compile_context>

<pallas_src>
import jax
import jax.numpy as jnp
from jax.experimental import pallas as pl
from jax.experimental.pallas import tpu as pltpu  # noqa: F401  (kept for TPU backend)

IN_FEATURES = 48 * 4 * 4   # 768
HIDDEN = 100
OUT_FEATURES = 10
LANES = 128                # lane-padded feature width
BN_EPS = 1e-5


def _bn_relu(h, gamma, beta):
    """Training-mode BatchNorm1d folded to scale/shift + ReLU.

    Per-feature stats over the batch (sublane) axis.  scale/shift are computed
    on (1, LANES) rows, so the only full-tile VPU work is one mul+add+max.
    Padded lanes hold exact zeros (mu=0, shift=0) and stay zero.
    """
    mu = jnp.mean(h, axis=0, keepdims=True)
    var = jnp.mean(h * h, axis=0, keepdims=True) - mu * mu      # biased variance
    scale = gamma * jax.lax.rsqrt(var + BN_EPS)                 # (1, LANES)
    shift = beta - mu * scale                                   # (1, LANES)
    return jnp.maximum(h * scale + shift, 0.0)


def class_classifier_kernel(x_ref, w1_ref, w2_ref, w3_ref, p_ref, o_ref):
    # Packed per-feature params: rows = [b1, g1, be1, b2, g2, be2, b3, pad].
    p = p_ref[...]
    b1, g1, be1 = p[0:1, :], p[1:2, :], p[2:3, :]
    b2, g2, be2 = p[3:4, :], p[4:5, :], p[5:6, :]
    b3 = p[6:7, :]

    x = x_ref[...]                                              # (B, 768) bf16

    # Linear 1 (MXU bf16 -> f32 acc) + folded BN + ReLU (VPU)
    h = jnp.dot(x, w1_ref[...], preferred_element_type=jnp.float32) + b1
    h = _bn_relu(h, g1, be1)

    # Linear 2 + BN + ReLU
    h = jnp.dot(h.astype(jnp.bfloat16), w2_ref[...],
                preferred_element_type=jnp.float32) + b2
    h = _bn_relu(h, g2, be2)

    # Linear 3 -> lane-dense (B, 128) output (cols 10..127 are exact zeros)
    out = jnp.dot(h.astype(jnp.bfloat16), w3_ref[...],
                  preferred_element_type=jnp.float32) + b3
    o_ref[...] = out.astype(o_ref.dtype)


def class_classifier(x, padded_params):
    """x: (B, 768) float32 -> (B, 10) float32."""
    w1p, w2p, w3p, packed = padded_params
    B = x.shape[0]
    out = pl.pallas_call(
        class_classifier_kernel,
        out_shape=jax.ShapeDtypeStruct((B, LANES), jnp.float32),
        # No grid: single whole-array invocation, so every operand is a full
        # VMEM-resident block and nothing gets pointlessly double-buffered.
    )(x.astype(jnp.bfloat16), w1p, w2p, w3p, packed)
    return out[:, :OUT_FEATURES]


def init_params(key):
    """Deterministic synthetic parameters matching the module's shapes."""
    ks = jax.random.split(key, 6)

    def linear(kw, kb, fan_in, fan_out):
        bound = 1.0 / jnp.sqrt(fan_in)
        w = jax.random.uniform(kw, (fan_in, fan_out), jnp.float32, -bound, bound)
        b = jax.random.uniform(kb, (fan_out,), jnp.float32, -bound, bound)
        return w, b

    w1, b1 = linear(ks[0], ks[1], IN_FEATURES, HIDDEN)
    w2, b2 = linear(ks[2], ks[3], HIDDEN, HIDDEN)
    w3, b3 = linear(ks[4], ks[5], HIDDEN, OUT_FEATURES)

    # BatchNorm1d affine params: weight=1, bias=0 at init.
    g1 = jnp.ones((HIDDEN,), jnp.float32)
    be1 = jnp.zeros((HIDDEN,), jnp.float32)
    g2 = jnp.ones((HIDDEN,), jnp.float32)
    be2 = jnp.zeros((HIDDEN,), jnp.float32)

    return (w1, b1, g1, be1, w2, b2, g2, be2, w3, b3)


def pad_and_pack(params):
    """Lane-pad weights (bf16) and pack the small vectors into one (8,128)."""
    w1, b1, g1, be1, w2, b2, g2, be2, w3, b3 = params

    def pad2d(w, rows, cols, dtype):
        out = jnp.zeros((rows, cols), dtype)
        return out.at[: w.shape[0], : w.shape[1]].set(w.astype(dtype))

    w1p = pad2d(w1, IN_FEATURES, LANES, jnp.bfloat16)
    w2p = pad2d(w2, LANES, LANES, jnp.bfloat16)
    w3p = pad2d(w3, LANES, LANES, jnp.bfloat16)

    def pad_row(v):
        return jnp.zeros((LANES,), jnp.float32).at[: v.shape[0]].set(v)

    packed = jnp.stack(
        [pad_row(b1), pad_row(g1), pad_row(be1),
         pad_row(b2), pad_row(g2), pad_row(be2),
         pad_row(b3), jnp.zeros((LANES,), jnp.float32)],
        axis=0,
    )  # (8, 128) f32
    return (w1p, w2p, w3p, packed)


def reference_forward(x, params):
    """Pure-JAX reference mirroring the kernel math (bf16 dots, f32 BN)."""
    w1, b1, g1, be1, w2, b2, g2, be2, w3, b3 = params

    def dot_bf16(a, w):
        return jnp.dot(a.astype(jnp.bfloat16), w.astype(jnp.bfloat16),
                       preferred_element_type=jnp.float32)

    def bn_relu(h, g, b):
        mu = jnp.mean(h, axis=0, keepdims=True)
        var = jnp.mean(h * h, axis=0, keepdims=True) - mu * mu
        scale = g * jax.lax.rsqrt(var + BN_EPS)
        shift = b - mu * scale
        return jnp.maximum(h * scale + shift, 0.0)

    h = bn_relu(dot_bf16(x, w1) + b1, g1, be1)
    h = bn_relu(dot_bf16(h, w2) + b2, g2, be2)
    return dot_bf16(h, w3) + b3


if __name__ == "__main__":
    key = jax.random.PRNGKey(0)
    kx, kp = jax.random.split(key)

    B = 8  # batch > 1 required for training-mode BatchNorm statistics
    x = jax.random.normal(kx, (B, IN_FEATURES), jnp.float32)
    params = init_params(kp)
    padded = pad_and_pack(params)

    out = class_classifier(x, padded)
    out = jax.block_until_ready(out)

    ref = reference_forward(x, params)
    assert out.shape == (B, OUT_FEATURES), out.shape
    max_err = float(jnp.max(jnp.abs(out - ref)))
    assert jnp.allclose(out, ref, atol=1e-3, rtol=1e-3), max_err

    print("KERNEL_OK")
</pallas_src>

<mosaic_0001>
module attributes {stable_mosaic.version = 11 : i64} {
  func.func @class_classifier_kernel(%arg0: memref<8x768xbf16, #tpu.memory_space<vmem>>, %arg1: memref<768x128xbf16, #tpu.memory_space<vmem>>, %arg2: memref<128x128xbf16, #tpu.memory_space<vmem>>, %arg3: memref<128x128xbf16, #tpu.memory_space<vmem>>, %arg4: memref<8x128xf32, #tpu.memory_space<vmem>>, %arg5: memref<8x128xf32, #tpu.memory_space<vmem>>) attributes {dimension_semantics = [], scalar_prefetch = 0 : i64, scratch_operands = 0 : i64, tpu.core_type = #tpu.core_type<tc>} {
    %c0 = arith.constant 0 : index
    %c0_0 = arith.constant 0 : index
    %0 = vector.load %arg4[%c0, %c0_0] : memref<8x128xf32, #tpu.memory_space<vmem>>, vector<8x128xf32>
    %1 = vector.extract_strided_slice %0 {offsets = [0, 0], sizes = [1, 128], strides = [1, 1]} : vector<8x128xf32> to vector<1x128xf32>
    %2 = vector.extract_strided_slice %0 {offsets = [1, 0], sizes = [1, 128], strides = [1, 1]} : vector<8x128xf32> to vector<1x128xf32>
    %3 = vector.extract_strided_slice %0 {offsets = [2, 0], sizes = [1, 128], strides = [1, 1]} : vector<8x128xf32> to vector<1x128xf32>
    %4 = vector.extract_strided_slice %0 {offsets = [3, 0], sizes = [1, 128], strides = [1, 1]} : vector<8x128xf32> to vector<1x128xf32>
    %5 = vector.extract_strided_slice %0 {offsets = [4, 0], sizes = [1, 128], strides = [1, 1]} : vector<8x128xf32> to vector<1x128xf32>
    %6 = vector.extract_strided_slice %0 {offsets = [5, 0], sizes = [1, 128], strides = [1, 1]} : vector<8x128xf32> to vector<1x128xf32>
    %7 = vector.extract_strided_slice %0 {offsets = [6, 0], sizes = [1, 128], strides = [1, 1]} : vector<8x128xf32> to vector<1x128xf32>
    %c0_1 = arith.constant 0 : index
    %c0_2 = arith.constant 0 : index
    %8 = vector.load %arg0[%c0_1, %c0_2] : memref<8x768xbf16, #tpu.memory_space<vmem>>, vector<8x768xbf16>
    %c0_3 = arith.constant 0 : index
    %c0_4 = arith.constant 0 : index
    %9 = vector.load %arg1[%c0_3, %c0_4] : memref<768x128xbf16, #tpu.memory_space<vmem>>, vector<768x128xbf16>
    %cst = arith.constant dense<0.000000e+00> : vector<8x128xf32>
    %10 = tpu.matmul %8, %9, %cst {dimension_numbers = #tpu.dot_dimension_numbers<[1], [0], [0], [1], [0, 0, 1, 1], [], []>} : vector<8x768xbf16>, vector<768x128xbf16>, vector<8x128xf32> -> vector<8x128xf32>
    %11 = vector.broadcast %1 : vector<1x128xf32> to vector<8x128xf32>
    %12 = arith.addf %10, %11 : vector<8x128xf32>
    %cst_5 = arith.constant dense<0.000000e+00> : vector<128xf32>
    %13 = vector.multi_reduction <add>, %12, %cst_5 [0] : vector<8x128xf32> to vector<128xf32>
    %14 = vector.shape_cast %13 : vector<128xf32> to vector<1x128xf32>
    %cst_6 = arith.constant 8.000000e+00 : f32
    %15 = vector.broadcast %cst_6 : f32 to vector<1x128xf32>
    %16 = arith.divf %14, %15 : vector<1x128xf32>
    %17 = arith.mulf %12, %12 : vector<8x128xf32>
    %cst_7 = arith.constant dense<0.000000e+00> : vector<128xf32>
    %18 = vector.multi_reduction <add>, %17, %cst_7 [0] : vector<8x128xf32> to vector<128xf32>
    %19 = vector.shape_cast %18 : vector<128xf32> to vector<1x128xf32>
    %cst_8 = arith.constant 8.000000e+00 : f32
    %20 = vector.broadcast %cst_8 : f32 to vector<1x128xf32>
    %21 = arith.divf %19, %20 : vector<1x128xf32>
    %22 = arith.mulf %16, %16 : vector<1x128xf32>
    %23 = arith.subf %21, %22 : vector<1x128xf32>
    %cst_9 = arith.constant 9.99999974E-6 : f32
    %24 = vector.broadcast %cst_9 : f32 to vector<1x128xf32>
    %25 = arith.addf %23, %24 : vector<1x128xf32>
    %26 = math.rsqrt %25 : vector<1x128xf32>
    %27 = arith.mulf %2, %26 : vector<1x128xf32>
    %28 = arith.mulf %16, %27 : vector<1x128xf32>
    %29 = arith.subf %3, %28 : vector<1x128xf32>
    %30 = vector.broadcast %27 : vector<1x128xf32> to vector<8x128xf32>
    %31 = arith.mulf %12, %30 : vector<8x128xf32>
    %32 = vector.broadcast %29 : vector<1x128xf32> to vector<8x128xf32>
    %33 = arith.addf %31, %32 : vector<8x128xf32>
    %cst_10 = arith.constant 0.000000e+00 : f32
    %34 = vector.broadcast %cst_10 : f32 to vector<8x128xf32>
    %35 = arith.maximumf %33, %34 : vector<8x128xf32>
    %36 = arith.truncf %35 : vector<8x128xf32> to vector<8x128xbf16>
    %c0_11 = arith.constant 0 : index
    %c0_12 = arith.constant 0 : index
    %37 = vector.load %arg2[%c0_11, %c0_12] : memref<128x128xbf16, #tpu.memory_space<vmem>>, vector<128x128xbf16>
    %cst_13 = arith.constant dense<0.000000e+00> : vector<8x128xf32>
    %38 = tpu.matmul %36, %37, %cst_13 {dimension_numbers = #tpu.dot_dimension_numbers<[1], [0], [0], [1], [0, 0, 1, 1], [], []>} : vector<8x128xbf16>, vector<128x128xbf16>, vector<8x128xf32> -> vector<8x128xf32>
    %39 = vector.broadcast %4 : vector<1x128xf32> to vector<8x128xf32>
    %40 = arith.addf %38, %39 : vector<8x128xf32>
    %cst_14 = arith.constant dense<0.000000e+00> : vector<128xf32>
    %41 = vector.multi_reduction <add>, %40, %cst_14 [0] : vector<8x128xf32> to vector<128xf32>
    %42 = vector.shape_cast %41 : vector<128xf32> to vector<1x128xf32>
    %cst_15 = arith.constant 8.000000e+00 : f32
    %43 = vector.broadcast %cst_15 : f32 to vector<1x128xf32>
    %44 = arith.divf %42, %43 : vector<1x128xf32>
    %45 = arith.mulf %40, %40 : vector<8x128xf32>
    %cst_16 = arith.constant dense<0.000000e+00> : vector<128xf32>
    %46 = vector.multi_reduction <add>, %45, %cst_16 [0] : vector<8x128xf32> to vector<128xf32>
    %47 = vector.shape_cast %46 : vector<128xf32> to vector<1x128xf32>
    %cst_17 = arith.constant 8.000000e+00 : f32
    %48 = vector.broadcast %cst_17 : f32 to vector<1x128xf32>
    %49 = arith.divf %47, %48 : vector<1x128xf32>
    %50 = arith.mulf %44, %44 : vector<1x128xf32>
    %51 = arith.subf %49, %50 : vector<1x128xf32>
    %cst_18 = arith.constant 9.99999974E-6 : f32
    %52 = vector.broadcast %cst_18 : f32 to vector<1x128xf32>
    %53 = arith.addf %51, %52 : vector<1x128xf32>
    %54 = math.rsqrt %53 : vector<1x128xf32>
    %55 = arith.mulf %5, %54 : vector<1x128xf32>
    %56 = arith.mulf %44, %55 : vector<1x128xf32>
    %57 = arith.subf %6, %56 : vector<1x128xf32>
    %58 = vector.broadcast %55 : vector<1x128xf32> to vector<8x128xf32>
    %59 = arith.mulf %40, %58 : vector<8x128xf32>
    %60 = vector.broadcast %57 : vector<1x128xf32> to vector<8x128xf32>
    %61 = arith.addf %59, %60 : vector<8x128xf32>
    %cst_19 = arith.constant 0.000000e+00 : f32
    %62 = vector.broadcast %cst_19 : f32 to vector<8x128xf32>
    %63 = arith.maximumf %61, %62 : vector<8x128xf32>
    %64 = arith.truncf %63 : vector<8x128xf32> to vector<8x128xbf16>
    %c0_20 = arith.constant 0 : index
    %c0_21 = arith.constant 0 : index
    %65 = vector.load %arg3[%c0_20, %c0_21] : memref<128x128xbf16, #tpu.memory_space<vmem>>, vector<128x128xbf16>
    %cst_22 = arith.constant dense<0.000000e+00> : vector<8x128xf32>
    %66 = tpu.matmul %64, %65, %cst_22 {dimension_numbers = #tpu.dot_dimension_numbers<[1], [0], [0], [1], [0, 0, 1, 1], [], []>} : vector<8x128xbf16>, vector<128x128xbf16>, vector<8x128xf32> -> vector<8x128xf32>
    %67 = vector.broadcast %7 : vector<1x128xf32> to vector<8x128xf32>
    %68 = arith.addf %66, %67 : vector<8x128xf32>
    %c0_23 = arith.constant 0 : index
    %c0_24 = arith.constant 0 : index
    %69 = vector.load %arg5[%c0_23, %c0_24] : memref<8x128xf32, #tpu.memory_space<vmem>>, vector<8x128xf32>
    tpu.vector_store %arg5[%c0_23, %c0_24], %68 {strides = array<i32>} : memref<8x128xf32, #tpu.memory_space<vmem>>, vector<8x128xf32>,
    return
  }
}

</mosaic_0001>

<llo_original>
// kernel: tpu_custom_call.1
$region0: #{tpu_custom_call.1}
  #allocation0 [shape = 'u32[]', space=smem, size = 0x4, offset = 0x4, fixed_abs, tag = 'smem constant byte address 0x4 - core index']
  #allocation1 [shape = 'u32[144,128]{1,0:T(1,128)}', space=vmem, size = 0x12000, scoped, tag = 'internal scratch']
  %s0 = inlined_call_operand.hbm [shape: bf16[8,768], index: 0, kind: input, shape index: {}]
  %s1 = inlined_call_operand.hbm [shape: bf16[768,128], index: 1, kind: input, shape index: {}]
  %s2 = inlined_call_operand.hbm [shape: bf16[128,128], index: 2, kind: input, shape index: {}]
  %s3 = inlined_call_operand.hbm [shape: bf16[128,128], index: 3, kind: input, shape index: {}]
  %s4 = inlined_call_operand.vmem [shape: f32[8,128], index: 4, kind: input, shape index: {}]
  %s5 = inlined_call_operand.hbm [shape: f32[8,128], index: 5, kind: output, shape index: {}]
  %s6 = sld [smem:[#allocation0]]
  $region46: #{tpu_custom_call.1} parent=0
    _
  %s8 = ssub.s32 1, %s6
  %s9 = scalar_select 0, %s8, %s6
  $region1: #{tpu_custom_call.1} parent=0
    #allocation2 [shape = 'u8[12288]{0}', space=vmem, size = 0x3000, scoped, tag = 'input window, operand 0, single buffered']
    #allocation3 [shape = 's32[1]{0}', space=sflag, size = 0x4, scoped, tag = 'scoped memory for tpu_custom_call.1']
    #allocation4 [shape = 's32[1]{0}', space=sflag, size = 0x4, scoped, tag = 'scoped memory for tpu_custom_call.1']
    #allocation5 [shape = 'u8[196608]{0}', space=vmem, size = 0x30000, scoped, tag = 'input window, operand 1, single buffered']
    #allocation6 [shape = 's32[1]{0}', space=sflag, size = 0x4, scoped, tag = 'scoped memory for tpu_custom_call.1']
    #allocation7 [shape = 'u8[32768]{0}', space=vmem, size = 0x8000, scoped, tag = 'input window, operand 2, single buffered']
    #allocation8 [shape = 'u8[32768]{0}', space=vmem, size = 0x8000, scoped, tag = 'input window, operand 3, single buffered']
    #allocation9 [shape = 's32[1]{0}', space=sflag, size = 0x4, scoped, tag = 'scoped memory for tpu_custom_call.1']
    #allocation10 [shape = 'u8[4096]{0}', space=vmem, size = 0x1000, scoped, tag = 'output window, operand 0, single buffered']
    %10 = vsyncpa [#allocation3], 0
    %11 = vsyncpa [#allocation6], 0
    %12 = vsyncpa [#allocation9], 0
    %13 = vsyncpa [#allocation4], 0
    // Predicated region
    $region2: #{tpu_custom_call.1} parent=1 // pred_check
      _
    $region3: #{tpu_custom_call.1} parent=1 // pred_check_branch
      %15 = sbr.rel (0) target = $region5
    $region4: #{tpu_custom_call.1} parent=1 // pred_region
      %s17 = ssub.s32 384, 384
      %18 = vsyncadd [#allocation3], %s17
      %s20 = sshll.u32 [#allocation2], 4
      %s21 = int_to_ptr.vmem [resolvable:$true] %s20
      %23 = dma.hbm_to_vmem [thread:$0]  %s0, 384, %s21, [#allocation3]
    $region5: #{tpu_custom_call.1} parent=1 // pred_fallthru
      _
    // Predicated region
    $region6: #{tpu_custom_call.1} parent=1 // pred_check
      _
    $region7: #{tpu_custom_call.1} parent=1 // pred_check_branch
      %25 = sbr.rel (0) target = $region9
    $region8: #{tpu_custom_call.1} parent=1 // pred_region
      %s27 = ssub.s32 6144, 6144
      %28 = vsyncadd [#allocation6], %s27
      %s29 = sshll.u32 [#allocation5], 4
      %s30 = int_to_ptr.vmem [resolvable:$true] %s29
      %35 = dma.hbm_to_vmem [thread:$0]  %s1, 6144, %s30, [#allocation6], 64, 64, 4
    $region9: #{tpu_custom_call.1} parent=1 // pred_fallthru
      _
    // Predicated region
    $region10: #{tpu_custom_call.1} parent=1 // pred_check
      _
    $region11: #{tpu_custom_call.1} parent=1 // pred_check_branch
      %37 = sbr.rel (0) target = $region13
    $region12: #{tpu_custom_call.1} parent=1 // pred_region
      %s39 = ssub.s32 1024, 1024
      %40 = vsyncadd [#allocation6], %s39
      %s41 = sshll.u32 [#allocation7], 4
      %s42 = int_to_ptr.vmem [resolvable:$true] %s41
      %47 = dma.hbm_to_vmem [thread:$0]  %s2, 1024, %s42, [#allocation6], 64, 64, 4
    $region13: #{tpu_custom_call.1} parent=1 // pred_fallthru
      _
    // Predicated region
    $region14: #{tpu_custom_call.1} parent=1 // pred_check
      _
    $region15: #{tpu_custom_call.1} parent=1 // pred_check_branch
      %49 = sbr.rel (0) target = $region17
    $region16: #{tpu_custom_call.1} parent=1 // pred_region
      %s51 = ssub.s32 1024, 1024
      %52 = vsyncadd [#allocation9], %s51
      %s53 = sshll.u32 [#allocation8], 4
      %s54 = int_to_ptr.vmem [resolvable:$true] %s53
      %59 = dma.hbm_to_vmem [thread:$0]  %s3, 1024, %s54, [#allocation9], 64, 64, 4
    $region17: #{tpu_custom_call.1} parent=1 // pred_fallthru
      _
    // Predicated region
    $region18: #{tpu_custom_call.1} parent=1 // pred_check
      _
    $region19: #{tpu_custom_call.1} parent=1 // pred_check_branch
      %61 = sbr.rel (0) target = $region21
    $region20: #{tpu_custom_call.1} parent=1 // pred_region
      _
    $region21: #{tpu_custom_call.1} parent=1 // pred_fallthru
      _
    // Predicated region
    $region22: #{tpu_custom_call.1} parent=1 // pred_check
      _
    $region23: #{tpu_custom_call.1} parent=1 // pred_check_branch
      %63 = sbr.rel (0) target = $region25
    $region24: #{tpu_custom_call.1} parent=1 // pred_region
      %64 = dma.done [#allocation3], 384
    $region25: #{tpu_custom_call.1} parent=1 // pred_fallthru
      _
    // Predicated region
    $region26: #{tpu_custom_call.1} parent=1 // pred_check
      _
    $region27: #{tpu_custom_call.1} parent=1 // pred_check_branch
      %66 = sbr.rel (0) target = $region29
    $region28: #{tpu_custom_call.1} parent=1 // pred_region
      %67 = dma.done [#allocation6], 6144
    $region29: #{tpu_custom_call.1} parent=1 // pred_fallthru
      _
    // Predicated region
    $region30: #{tpu_custom_call.1} parent=1 // pred_check
      _
    $region31: #{tpu_custom_call.1} parent=1 // pred_check_branch
      %69 = sbr.rel (0) target = $region33
    $region32: #{tpu_custom_call.1} parent=1 // pred_region
      %70 = dma.done [#allocation6], 1024
    $region33: #{tpu_custom_call.1} parent=1 // pred_fallthru
      _
    // Predicated region
    $region34: #{tpu_custom_call.1} parent=1 // pred_check
      _
    $region35: #{tpu_custom_call.1} parent=1 // pred_check_branch
      %72 = sbr.rel (0) target = $region37
    $region36: #{tpu_custom_call.1} parent=1 // pred_region
      %73 = dma.done [#allocation9], 1024
    $region37: #{tpu_custom_call.1} parent=1 // pred_fallthru
      _
    %v75 = vld [vmem:[%s4] sm:$0xff]
    %v76 = vld [vmem:[#allocation2] sm:$0xff]
    %v77 = vld [vmem:[#allocation2 + $0x8] sm:$0xff]
    %v78 = vld [vmem:[#allocation2 + $0x10] sm:$0xff]
    %v79 = vld [vmem:[#allocation5] sm:$0xf]
    %v80 = vld [vmem:[#allocation5 + $0x4] sm:$0xf]
    %v81 = vld [vmem:[#allocation5 + $0x8] sm:$0xf]
    %v82 = vld [vmem:[#allocation5 + $0xc] sm:$0xf]
    %v83 = vld [vmem:[#allocation5 + $0x10] sm:$0xf]
    %v84 = vld [vmem:[#allocation5 + $0x14] sm:$0xf]
    %v85 = vld [vmem:[#allocation5 + $0x18] sm:$0xf]
    %v86 = vld [vmem:[#allocation5 + $0x1c] sm:$0xf]
    %v87 = vld [vmem:[#allocation5 + $0x20] sm:$0xf]
    %v88 = vld [vmem:[#allocation5 + $0x24] sm:$0xf]
    %v89 = vld [vmem:[#allocation5 + $0x28] sm:$0xf]
    %v90 = vld [vmem:[#allocation5 + $0x2c] sm:$0xf]
    %v91 = vld [vmem:[#allocation5 + $0x30] sm:$0xf]
    %v92 = vld [vmem:[#allocation5 + $0x34] sm:$0xf]
    %v93 = vld [vmem:[#allocation5 + $0x38] sm:$0xf]
    %v94 = vld [vmem:[#allocation5 + $0x3c] sm:$0xf]
    %v95 = vld [vmem:[#allocation5 + $0x40] sm:$0xf]
    %v96 = vld [vmem:[#allocation5 + $0x44] sm:$0xf]
    %v97 = vld [vmem:[#allocation5 + $0x48] sm:$0xf]
    %v98 = vld [vmem:[#allocation5 + $0x4c] sm:$0xf]
    %v99 = vld [vmem:[#allocation5 + $0x50] sm:$0xf]
    %v100 = vld [vmem:[#allocation5 + $0x54] sm:$0xf]
    %v101 = vld [vmem:[#allocation5 + $0x58] sm:$0xf]
    %v102 = vld [vmem:[#allocation5 + $0x5c] sm:$0xf]
    %v103 = vld [vmem:[#allocation5 + $0x60] sm:$0xf]
    %v104 = vld [vmem:[#allocation5 + $0x64] sm:$0xf]
    %v105 = vld [vmem:[#allocation5 + $0x68] sm:$0xf]
    %v106 = vld [vmem:[#allocation5 + $0x6c] sm:$0xf]
    %v107 = vld [vmem:[#allocation5 + $0x70] sm:$0xf]
    %v108 = vld [vmem:[#allocation5 + $0x74] sm:$0xf]
    %v109 = vld [vmem:[#allocation5 + $0x78] sm:$0xf]
    %v110 = vld [vmem:[#allocation5 + $0x7c] sm:$0xf]
    %v111 = vld [vmem:[#allocation5 + $0x80] sm:$0xf]
    %v112 = vld [vmem:[#allocation5 + $0x84] sm:$0xf]
    %v113 = vld [vmem:[#allocation5 + $0x88] sm:$0xf]
    %v114 = vld [vmem:[#allocation5 + $0x8c] sm:$0xf]
    %v115 = vld [vmem:[#allocation5 + $0x90] sm:$0xf]
    %v116 = vld [vmem:[#allocation5 + $0x94] sm:$0xf]
    %v117 = vld [vmem:[#allocation5 + $0x98] sm:$0xf]
    %v118 = vld [vmem:[#allocation5 + $0x9c] sm:$0xf]
    %v119 = vld [vmem:[#allocation5 + $0xa0] sm:$0xf]
    %v120 = vld [vmem:[#allocation5 + $0xa4] sm:$0xf]
    %v121 = vld [vmem:[#allocation5 + $0xa8] sm:$0xf]
    %v122 = vld [vmem:[#allocation5 + $0xac] sm:$0xf]
    %v123 = vld [vmem:[#allocation5 + $0xb0] sm:$0xf]
    %v124 = vld [vmem:[#allocation5 + $0xb4] sm:$0xf]
    %v125 = vld [vmem:[#allocation5 + $0xb8] sm:$0xf]
    %v126 = vld [vmem:[#allocation5 + $0xbc] sm:$0xf]
    %v127 = vld [vmem:[#allocation5 + $0xc0] sm:$0xf]
    %v128 = vld [vmem:[#allocation5 + $0xc4] sm:$0xf]
    %v129 = vld [vmem:[#allocation5 + $0xc8] sm:$0xf]
    %v130 = vld [vmem:[#allocation5 + $0xcc] sm:$0xf]
    %v131 = vld [vmem:[#allocation5 + $0xd0] sm:$0xf]
    %v132 = vld [vmem:[#allocation5 + $0xd4] sm:$0xf]
    %v133 = vld [vmem:[#allocation5 + $0xd8] sm:$0xf]
    %v134 = vld [vmem:[#allocation5 + $0xdc] sm:$0xf]
    %v135 = vld [vmem:[#allocation5 + $0xe0] sm:$0xf]
    %v136 = vld [vmem:[#allocation5 + $0xe4] sm:$0xf]
    %v137 = vld [vmem:[#allocation5 + $0xe8] sm:$0xf]
    %v138 = vld [vmem:[#allocation5 + $0xec] sm:$0xf]
    %v139 = vld [vmem:[#allocation5 + $0xf0] sm:$0xf]
    %v140 = vld [vmem:[#allocation5 + $0xf4] sm:$0xf]
    %v141 = vld [vmem:[#allocation5 + $0xf8] sm:$0xf]
    %v142 = vld [vmem:[#allocation5 + $0xfc] sm:$0xf]
    %v143 = vld [vmem:[#allocation5 + $0x100] sm:$0xf]
    %v144 = vld [vmem:[#allocation5 + $0x104] sm:$0xf]
    %v145 = vld [vmem:[#allocation5 + $0x108] sm:$0xf]
    %v146 = vld [vmem:[#allocation5 + $0x10c] sm:$0xf]
    %v147 = vld [vmem:[#allocation5 + $0x110] sm:$0xf]
    %v148 = vld [vmem:[#allocation5 + $0x114] sm:$0xf]
    %v149 = vld [vmem:[#allocation5 + $0x118] sm:$0xf]
    %v150 = vld [vmem:[#allocation5 + $0x11c] sm:$0xf]
    %v151 = vld [vmem:[#allocation5 + $0x120] sm:$0xf]
    %v152 = vld [vmem:[#allocation5 + $0x124] sm:$0xf]
    %v153 = vld [vmem:[#allocation5 + $0x128] sm:$0xf]
    %v154 = vld [vmem:[#allocation5 + $0x12c] sm:$0xf]
    %v155 = vld [vmem:[#allocation5 + $0x130] sm:$0xf]
    %v156 = vld [vmem:[#allocation5 + $0x134] sm:$0xf]
    %v157 = vld [vmem:[#allocation5 + $0x138] sm:$0xf]
    %v158 = vld [vmem:[#allocation5 + $0x13c] sm:$0xf]
    %v159 = vld [vmem:[#allocation5 + $0x140] sm:$0xf]
    %v160 = vld [vmem:[#allocation5 + $0x144] sm:$0xf]
    %v161 = vld [vmem:[#allocation5 + $0x148] sm:$0xf]
    %v162 = vld [vmem:[#allocation5 + $0x14c] sm:$0xf]
    %v163 = vld [vmem:[#allocation5 + $0x150] sm:$0xf]
    %v164 = vld [vmem:[#allocation5 + $0x154] sm:$0xf]
    %v165 = vld [vmem:[#allocation5 + $0x158] sm:$0xf]
    %v166 = vld [vmem:[#allocation5 + $0x15c] sm:$0xf]
    %v167 = vld [vmem:[#allocation5 + $0x160] sm:$0xf]
    %v168 = vld [vmem:[#allocation5 + $0x164] sm:$0xf]
    %v169 = vld [vmem:[#allocation5 + $0x168] sm:$0xf]
    %v170 = vld [vmem:[#allocation5 + $0x16c] sm:$0xf]
    %v171 = vld [vmem:[#allocation5 + $0x170] sm:$0xf]
    %v172 = vld [vmem:[#allocation5 + $0x174] sm:$0xf]
    %v173 = vld [vmem:[#allocation5 + $0x178] sm:$0xf]
    %v174 = vld [vmem:[#allocation5 + $0x17c] sm:$0xf]
    %v175 = vlaneseq
    %v176 = vshrl.u32 %v175, 7
    %v177 = vsub.s32 0, %v176
    %v178 = vrot.slane %v75, %v177
    %v182 = vunpack.c.l.b16 %v76
    %v183 = vunpack.c.h.b16 %v76
    %v184 = vunpack.c.l.b16 %v77
    %v185 = vunpack.c.h.b16 %v77
    %v186 = vunpack.c.l.b16 %v78
    %v187 = vunpack.c.h.b16 %v78
    %v188 = vpack.c.b16 %v182, %v182
    %v189 = vpack.c.b16 %v183, %v183
    %v190 = vpack.c.b16 %v184, %v184
    %v191 = vpack.c.b16 %v185, %v185
    %v192 = vpack.c.b16 %v186, %v186
    %v193 = vpack.c.b16 %v187, %v187
    %v296 = vunpack.c.l.b16 %v79
    %v297 = vunpack.c.l.b16 %v80
    %v298 = vunpack.c.l.b16 %v81
    %v299 = vunpack.c.l.b16 %v82
    %v300 = vunpack.c.l.b16 %v83
    %v301 = vunpack.c.l.b16 %v84
    %v302 = vunpack.c.l.b16 %v85
    %v303 = vunpack.c.l.b16 %v86
    %v304 = vunpack.c.l.b16 %v87
    %v305 = vunpack.c.l.b16 %v88
    %v306 = vunpack.c.l.b16 %v89
    %v307 = vunpack.c.l.b16 %v90
    %v308 = vunpack.c.l.b16 %v91
    %v309 = vunpack.c.l.b16 %v92
    %v310 = vunpack.c.l.b16 %v93
    %v311 = vunpack.c.l.b16 %v94
    %v312 = vunpack.c.l.b16 %v95
    %v313 = vunpack.c.l.b16 %v96
    %v314 = vunpack.c.l.b16 %v97
    %v315 = vunpack.c.l.b16 %v98
    %v316 = vunpack.c.l.b16 %v99
    %v317 = vunpack.c.l.b16 %v100
    %v318 = vunpack.c.l.b16 %v101
    %v319 = vunpack.c.l.b16 %v102
    %v320 = vunpack.c.l.b16 %v103
    %v321 = vunpack.c.l.b16 %v104
    %v322 = vunpack.c.l.b16 %v105
    %v323 = vunpack.c.l.b16 %v106
    %v324 = vunpack.c.l.b16 %v107
    %v325 = vunpack.c.l.b16 %v108
    %v326 = vunpack.c.l.b16 %v109
    %v327 = vunpack.c.l.b16 %v110
    %v328 = vunpack.c.l.b16 %v111
    %v329 = vunpack.c.l.b16 %v112
    %v330 = vunpack.c.l.b16 %v113
    %v331 = vunpack.c.l.b16 %v114
    %v332 = vunpack.c.l.b16 %v115
    %v333 = vunpack.c.l.b16 %v116
    %v334 = vunpack.c.l.b16 %v117
    %v335 = vunpack.c.l.b16 %v118
    %v336 = vunpack.c.l.b16 %v119
    %v337 = vunpack.c.l.b16 %v120
    %v338 = vunpack.c.l.b16 %v121
    %v339 = vunpack.c.l.b16 %v122
    %v340 = vunpack.c.l.b16 %v123
    %v341 = vunpack.c.l.b16 %v124
    %v342 = vunpack.c.l.b16 %v125
    %v343 = vunpack.c.l.b16 %v126
    %v344 = vunpack.c.l.b16 %v127
    %v345 = vunpack.c.l.b16 %v128
    %v346 = vunpack.c.l.b16 %v129
    %v347 = vunpack.c.l.b16 %v130
    %v348 = vunpack.c.l.b16 %v131
    %v349 = vunpack.c.l.b16 %v132
    %v350 = vunpack.c.l.b16 %v133
    %v351 = vunpack.c.l.b16 %v134
    %v352 = vunpack.c.l.b16 %v135
    %v353 = vunpack.c.l.b16 %v136
    %v354 = vunpack.c.l.b16 %v137
    %v355 = vunpack.c.l.b16 %v138
    %v356 = vunpack.c.l.b16 %v139
    %v357 = vunpack.c.l.b16 %v140
    %v358 = vunpack.c.l.b16 %v141
    %v359 = vunpack.c.l.b16 %v142
    %v360 = vunpack.c.l.b16 %v143
    %v361 = vunpack.c.l.b16 %v144
    %v362 = vunpack.c.l.b16 %v145
    %v363 = vunpack.c.l.b16 %v146
    %v364 = vunpack.c.l.b16 %v147
    %v365 = vunpack.c.l.b16 %v148
    %v366 = vunpack.c.l.b16 %v149
    %v367 = vunpack.c.l.b16 %v150
    %v368 = vunpack.c.l.b16 %v151
    %v369 = vunpack.c.l.b16 %v152
    %v370 = vunpack.c.l.b16 %v153
    %v371 = vunpack.c.l.b16 %v154
    %v372 = vunpack.c.l.b16 %v155
    %v373 = vunpack.c.l.b16 %v156
    %v374 = vunpack.c.l.b16 %v157
    %v375 = vunpack.c.l.b16 %v158
    %v376 = vunpack.c.l.b16 %v159
    %v377 = vunpack.c.l.b16 %v160
    %v378 = vunpack.c.l.b16 %v161
    %v379 = vunpack.c.l.b16 %v162
    %v380 = vunpack.c.l.b16 %v163
    %v381 = vunpack.c.l.b16 %v164
    %v382 = vunpack.c.l.b16 %v165
    %v383 = vunpack.c.l.b16 %v166
    %v384 = vunpack.c.l.b16 %v167
    %v385 = vunpack.c.l.b16 %v168
    %v386 = vunpack.c.l.b16 %v169
    %v387 = vunpack.c.l.b16 %v170
    %v388 = vunpack.c.l.b16 %v171
    %v389 = vunpack.c.l.b16 %v172
    %v390 = vunpack.c.l.b16 %v173
    %v391 = vunpack.c.l.b16 %v174
    %v392 = vpack.c.b16 %v297, %v296
    %v393 = vpack.c.b16 %v299, %v298
    %v394 = vpack.c.b16 %v301, %v300
    %v395 = vpack.c.b16 %v303, %v302
    %v396 = vpack.c.b16 %v305, %v304
    %v397 = vpack.c.b16 %v307, %v306
    %v398 = vpack.c.b16 %v309, %v308
    %v399 = vpack.c.b16 %v311, %v310
    %v400 = vpack.c.b16 %v313, %v312
    %v401 = vpack.c.b16 %v315, %v314
    %v402 = vpack.c.b16 %v317, %v316
    %v403 = vpack.c.b16 %v319, %v318
    %v404 = vpack.c.b16 %v321, %v320
    %v405 = vpack.c.b16 %v323, %v322
    %v406 = vpack.c.b16 %v325, %v324
    %v407 = vpack.c.b16 %v327, %v326
    %v408 = vpack.c.b16 %v329, %v328
    %v409 = vpack.c.b16 %v331, %v330
    %v410 = vpack.c.b16 %v333, %v332
    %v411 = vpack.c.b16 %v335, %v334
    %v412 = vpack.c.b16 %v337, %v336
    %v413 = vpack.c.b16 %v339, %v338
    %v414 = vpack.c.b16 %v341, %v340
    %v415 = vpack.c.b16 %v343, %v342
    %v416 = vpack.c.b16 %v345, %v344
    %v417 = vpack.c.b16 %v347, %v346
    %v418 = vpack.c.b16 %v349, %v348
    %v419 = vpack.c.b16 %v351, %v350
    %v420 = vpack.c.b16 %v353, %v352
    %v421 = vpack.c.b16 %v355, %v354
    %v422 = vpack.c.b16 %v357, %v356
    %v423 = vpack.c.b16 %v359, %v358
    %v424 = vpack.c.b16 %v361, %v360
    %v425 = vpack.c.b16 %v363, %v362
    %v426 = vpack.c.b16 %v365, %v364
    %v427 = vpack.c.b16 %v367, %v366
    %v428 = vpack.c.b16 %v369, %v368
    %v429 = vpack.c.b16 %v371, %v370
    %v430 = vpack.c.b16 %v373, %v372
    %v431 = vpack.c.b16 %v375, %v374
    %v432 = vpack.c.b16 %v377, %v376
    %v433 = vpack.c.b16 %v379, %v378
    %v434 = vpack.c.b16 %v381, %v380
    %v435 = vpack.c.b16 %v383, %v382
    %v436 = vpack.c.b16 %v385, %v384
    %v437 = vpack.c.b16 %v387, %v386
    %v438 = vpack.c.b16 %v389, %v388
    %v439 = vpack.c.b16 %v391, %v390
    %488 = vmatprep.subr.bf16.mxu0 0
    %489 = vmatpush1.bf16.msra.mxu0 %v392
    %490 = vmatprep.subr.bf16.mxu0 0
    %491 = vmatpush1.bf16.msra.mxu0 %v393
    %492 = vmatprep.subr.bf16.mxu0 0
    %493 = vmatpush1.bf16.msra.mxu0 %v394
    %494 = vmatprep.subr.bf16.mxu0 0
    %495 = vmatpush1.bf16.msra.mxu0 %v395
    %496 = vmatprep.subr.bf16.mxu0 0
    %497 = vmatpush1.bf16.msra.mxu0 %v396
    %498 = vmatprep.subr.bf16.mxu0 0
    %499 = vmatpush1.bf16.msra.mxu0 %v397
    %500 = vmatprep.subr.bf16.mxu0 0
    %501 = vmatpush1.bf16.msra.mxu0 %v398
    %502 = vmatprep.subr.bf16.mxu0 0
    %503 = vmatpush1.bf16.msra.mxu0 %v399
    %504 = vmatprep.subr.bf16.mxu0 0
    %505 = vmatpush1.bf16.msra.mxu0 %v400
    %506 = vmatprep.subr.bf16.mxu0 0
    %507 = vmatpush1.bf16.msra.mxu0 %v401
    %508 = vmatprep.subr.bf16.mxu0 0
    %509 = vmatpush1.bf16.msra.mxu0 %v402
    %510 = vmatprep.subr.bf16.mxu0 0
    %511 = vmatpush1.bf16.msra.mxu0 %v403
    %512 = vmatprep.subr.bf16.mxu0 0
    %513 = vmatpush1.bf16.msra.mxu0 %v404
    %514 = vmatprep.subr.bf16.mxu0 0
    %515 = vmatpush1.bf16.msra.mxu0 %v405
    %516 = vmatprep.subr.bf16.mxu0 0
    %517 = vmatpush1.bf16.msra.mxu0 %v406
    %518 = vmatprep.subr.bf16.mxu0 0
    %519 = vmatpush1.bf16.msra.mxu0 %v407
    %520 = vmatprep.mubr.bf16.mxu0 %v189
    %521 = vmatmul.mubr.bf16.gmra.mrb[0].mxu0 %v188
    %v522 = vpop.f32.mrb[0].mxu0
    %v523 = vadd.f32 %v178, %v522
    %v524 = vpop.f32.mrb[0].mxu0
    %v525 = vpop.f32.mrb[0].mxu0
    %v526 = vpop.f32.mrb[0].mxu0
    %527 = vdwg.mxu0
    %528 = vmatprep.subr.bf16.mxu0 0
    %529 = vmatpush1.bf16.msra.mxu0 %v408
    %530 = vmatprep.subr.bf16.mxu0 0
    %531 = vmatpush1.bf16.msra.mxu0 %v409
    %532 = vmatprep.subr.bf16.mxu0 0
    %533 = vmatpush1.bf16.msra.mxu0 %v410
    %534 = vmatprep.subr.bf16.mxu0 0
    %535 = vmatpush1.bf16.msra.mxu0 %v411
    %536 = vmatprep.subr.bf16.mxu0 0
    %537 = vmatpush1.bf16.msra.mxu0 %v412
    %538 = vmatprep.subr.bf16.mxu0 0
    %539 = vmatpush1.bf16.msra.mxu0 %v413
    %540 = vmatprep.subr.bf16.mxu0 0
    %541 = vmatpush1.bf16.msra.mxu0 %v414
    %542 = vmatprep.subr.bf16.mxu0 0
    %543 = vmatpush1.bf16.msra.mxu0 %v415
    %544 = vmatprep.subr.bf16.mxu0 0
    %545 = vmatpush1.bf16.msra.mxu0 %v416
    %546 = vmatprep.subr.bf16.mxu0 0
    %547 = vmatpush1.bf16.msra.mxu0 %v417
    %548 = vmatprep.subr.bf16.mxu0 0
    %549 = vmatpush1.bf16.msra.mxu0 %v418
    %550 = vmatprep.subr.bf16.mxu0 0
    %551 = vmatpush1.bf16.msra.mxu0 %v419
    %552 = vmatprep.subr.bf16.mxu0 0
    %553 = vmatpush1.bf16.msra.mxu0 %v420
    %554 = vmatprep.subr.bf16.mxu0 0
    %555 = vmatpush1.bf16.msra.mxu0 %v421
    %556 = vmatprep.subr.bf16.mxu0 0
    %557 = vmatpush1.bf16.msra.mxu0 %v422
    %558 = vmatprep.subr.bf16.mxu0 0
    %559 = vmatpush1.bf16.msra.mxu0 %v423
    %560 = vmatprep.mubr.bf16.mxu0 %v191
    %561 = vmatmul.mubr.bf16.gmra.mrb[0].mxu0 %v190
    %v562 = vpop.f32.mrb[0].mxu0
    %v563 = vadd.f32 %v523, %v562
    %v564 = vpop.f32.mrb[0].mxu0
    %v565 = vpop.f32.mrb[0].mxu0
    %v566 = vpop.f32.mrb[0].mxu0
    %567 = vdwg.mxu0
    %568 = vmatprep.subr.bf16.mxu0 0
    %569 = vmatpush1.bf16.msra.mxu0 %v424
    %570 = vmatprep.subr.bf16.mxu0 0
    %571 = vmatpush1.bf16.msra.mxu0 %v425
    %572 = vmatprep.subr.bf16.mxu0 0
    %573 = vmatpush1.bf16.msra.mxu0 %v426
    %574 = vmatprep.subr.bf16.mxu0 0
    %575 = vmatpush1.bf16.msra.mxu0 %v427
    %576 = vmatprep.subr.bf16.mxu0 0
    %577 = vmatpush1.bf16.msra.mxu0 %v428
    %578 = vmatprep.subr.bf16.mxu0 0
    %579 = vmatpush1.bf16.msra.mxu0 %v429
    %580 = vmatprep.subr.bf16.mxu0 0
    %581 = vmatpush1.bf16.msra.mxu0 %v430
    %582 = vmatprep.subr.bf16.mxu0 0
    %583 = vmatpush1.bf16.msra.mxu0 %v431
    %584 = vmatprep.subr.bf16.mxu0 0
    %585 = vmatpush1.bf16.msra.mxu0 %v432
    %586 = vmatprep.subr.bf16.mxu0 0
    %587 = vmatpush1.bf16.msra.mxu0 %v433
    %588 = vmatprep.subr.bf16.mxu0 0
    %589 = vmatpush1.bf16.msra.mxu0 %v434
    %590 = vmatprep.subr.bf16.mxu0 0
    %591 = vmatpush1.bf16.msra.mxu0 %v435
    %592 = vmatprep.subr.bf16.mxu0 0
    %593 = vmatpush1.bf16.msra.mxu0 %v436
    %594 = vmatprep.subr.bf16.mxu0 0
    %595 = vmatpush1.bf16.msra.mxu0 %v437
    %596 = vmatprep.subr.bf16.mxu0 0
    %597 = vmatpush1.bf16.msra.mxu0 %v438
    %598 = vmatprep.subr.bf16.mxu0 0
    %599 = vmatpush1.bf16.msra.mxu0 %v439
    %600 = vmatprep.mubr.bf16.mxu0 %v193
    %601 = vmatmul.mubr.bf16.gmra.mrb[0].mxu0 %v192
    %v602 = vpop.f32.mrb[0].mxu0
    %v603 = vadd.f32 %v563, %v602
    %v604 = vpop.f32.mrb[0].mxu0
    %v605 = vpop.f32.mrb[0].mxu0
    %v606 = vpop.f32.mrb[0].mxu0
    %607 = vdwg.mxu0
    %v608 = vrot.slane %v603, 4
    %v609 = vadd.f32 %v603, %v608
    %v610 = vrot.slane %v609, 2
    %v611 = vadd.f32 %v609, %v610
    %v612 = vrot.slane %v611, 1
    %v613 = vadd.f32 %v611, %v612
    %v614 = vrcp.pop 8.0
    %v615 = vmul.f32 %v613, %v614
    %v616 = vmul.f32 %v603, %v603
    %v617 = vrot.slane %v616, 4
    %v618 = vadd.f32 %v616, %v617
    %v619 = vrot.slane %v618, 2
    %v620 = vadd.f32 %v618, %v619
    %v621 = vrot.slane %v620, 1
    %v622 = vadd.f32 %v620, %v621
    %v623 = vmul.f32 %v622, %v614
    %v624 = vmul.f32 %v615, %v615
    %v625 = vsub.f32 %v623, %v624
    %v626 = vadd.f32 %v625, 1e-05
    %v627 = vrsqrt.pop %v626
    %v628 = vmul.f32 %v75, %v627
    %v629 = vmul.f32 %v615, %v628
    %v631 = vrot.slane %v629, 7
    %v633 = vsub.f32 %v75, %v631
    %v634 = vlaneseq
    %v635 = vshrl.u32 %v634, 7
    %v636 = vsub.s32 1, %v635
    %v637 = vrot.slane %v628, %v636
    %v638 = vmul.f32 %v603, %v637
    %v639 = vlaneseq
    %v640 = vshrl.u32 %v639, 7
    %v641 = vsub.s32 2, %v640
    %v642 = vrot.slane %v633, %v641
    %v643 = vadd.f32 %v638, %v642
    %v644 = vmax.f32 %v643, 0.0
    %v645 = vpack.c.bf16 %v644, %v644
    %v646 = vld [vmem:[#allocation7] sm:$0xf]
    %v647 = vld [vmem:[#allocation7 + $0x4] sm:$0xf]
    %v648 = vld [vmem:[#allocation7 + $0x8] sm:$0xf]
    %v649 = vld [vmem:[#allocation7 + $0xc] sm:$0xf]
    %v650 = vld [vmem:[#allocation7 + $0x10] sm:$0xf]
    %v651 = vld [vmem:[#allocation7 + $0x14] sm:$0xf]
    %v652 = vld [vmem:[#allocation7 + $0x18] sm:$0xf]
    %v653 = vld [vmem:[#allocation7 + $0x1c] sm:$0xf]
    %v654 = vld [vmem:[#allocation7 + $0x20] sm:$0xf]
    %v655 = vld [vmem:[#allocation7 + $0x24] sm:$0xf]
    %v656 = vld [vmem:[#allocation7 + $0x28] sm:$0xf]
    %v657 = vld [vmem:[#allocation7 + $0x2c] sm:$0xf]
    %v658 = vld [vmem:[#allocation7 + $0x30] sm:$0xf]
    %v659 = vld [vmem:[#allocation7 + $0x34] sm:$0xf]
    %v660 = vld [vmem:[#allocation7 + $0x38] sm:$0xf]
    %v661 = vld [vmem:[#allocation7 + $0x3c] sm:$0xf]
    %v662 = vlaneseq
    %v663 = vshrl.u32 %v662, 7
    %v664 = vsub.s32 3, %v663
    %v665 = vrot.slane %v75, %v664
    %v682 = vunpack.c.l.b16 %v646
    %v683 = vunpack.c.l.b16 %v647
    %v684 = vunpack.c.l.b16 %v648
    %v685 = vunpack.c.l.b16 %v649
    %v686 = vunpack.c.l.b16 %v650
    %v687 = vunpack.c.l.b16 %v651
    %v688 = vunpack.c.l.b16 %v652
    %v689 = vunpack.c.l.b16 %v653
    %v690 = vunpack.c.l.b16 %v654
    %v691 = vunpack.c.l.b16 %v655
    %v692 = vunpack.c.l.b16 %v656
    %v693 = vunpack.c.l.b16 %v657
    %v694 = vunpack.c.l.b16 %v658
    %v695 = vunpack.c.l.b16 %v659
    %v696 = vunpack.c.l.b16 %v660
    %v697 = vunpack.c.l.b16 %v661
    %v698 = vpack.c.b16 %v683, %v682
    %v699 = vpack.c.b16 %v685, %v684
    %v700 = vpack.c.b16 %v687, %v686
    %v701 = vpack.c.b16 %v689, %v688
    %v702 = vpack.c.b16 %v691, %v690
    %v703 = vpack.c.b16 %v693, %v692
    %v704 = vpack.c.b16 %v695, %v694
    %v705 = vpack.c.b16 %v697, %v696
    %714 = vmatprep.subr.bf16.mxu0 0
    %715 = vmatpush1.bf16.msra.mxu0 %v698
    %716 = vmatprep.subr.bf16.mxu0 0
    %717 = vmatpush1.bf16.msra.mxu0 %v699
    %718 = vmatprep.subr.bf16.mxu0 0
    %719 = vmatpush1.bf16.msra.mxu0 %v700
    %720 = vmatprep.subr.bf16.mxu0 0
    %721 = vmatpush1.bf16.msra.mxu0 %v701
    %722 = vmatprep.subr.bf16.mxu0 0
    %723 = vmatpush1.bf16.msra.mxu0 %v702
    %724 = vmatprep.subr.bf16.mxu0 0
    %725 = vmatpush1.bf16.msra.mxu0 %v703
    %726 = vmatprep.subr.bf16.mxu0 0
    %727 = vmatpush1.bf16.msra.mxu0 %v704
    %728 = vmatprep.subr.bf16.mxu0 0
    %729 = vmatpush1.bf16.msra.mxu0 %v705
    %730 = vmatprep.subr.bf16.mxu0 0
    %731 = vmatpush1.bf16.msra.mxu0 0
    %732 = vmatprep.subr.bf16.mxu0 0
    %733 = vmatpush1.bf16.msra.mxu0 0
    %734 = vmatprep.subr.bf16.mxu0 0
    %735 = vmatpush1.bf16.msra.mxu0 0
    %736 = vmatprep.subr.bf16.mxu0 0
    %737 = vmatpush1.bf16.msra.mxu0 0
    %738 = vmatprep.subr.bf16.mxu0 0
    %739 = vmatpush1.bf16.msra.mxu0 0
    %740 = vmatprep.subr.bf16.mxu0 0
    %741 = vmatpush1.bf16.msra.mxu0 0
    %742 = vmatprep.subr.bf16.mxu0 0
    %743 = vmatpush1.bf16.msra.mxu0 0
    %744 = vmatprep.subr.bf16.mxu0 0
    %745 = vmatpush1.bf16.msra.mxu0 0
    %746 = vmatprep.mubr.bf16.mxu0 0
    %747 = vmatmul.mubr.bf16.gmra.mrb[0].mxu0 %v645
    %v748 = vpop.f32.mrb[0].mxu0
    %v749 = vadd.f32 %v665, %v748
    %v750 = vpop.f32.mrb[0].mxu0
    %v751 = vpop.f32.mrb[0].mxu0
    %v752 = vpop.f32.mrb[0].mxu0
    %753 = vdwg.mxu0
    %v754 = vrot.slane %v749, 4
    %v755 = vadd.f32 %v749, %v754
    %v756 = vrot.slane %v755, 2
    %v757 = vadd.f32 %v755, %v756
    %v758 = vrot.slane %v757, 1
    %v759 = vadd.f32 %v757, %v758
    %v760 = vmul.f32 %v759, %v614
    %v761 = vmul.f32 %v749, %v749
    %v762 = vrot.slane %v761, 4
    %v763 = vadd.f32 %v761, %v762
    %v764 = vrot.slane %v763, 2
    %v765 = vadd.f32 %v763, %v764
    %v766 = vrot.slane %v765, 1
    %v767 = vadd.f32 %v765, %v766
    %v768 = vmul.f32 %v767, %v614
    %v769 = vmul.f32 %v760, %v760
    %v770 = vsub.f32 %v768, %v769
    %v771 = vadd.f32 %v770, 1e-05
    %v772 = vrsqrt.pop %v771
    %v773 = vmul.f32 %v75, %v772
    %v774 = vmul.f32 %v760, %v773
    %v776 = vrot.slane %v774, 7
    %v778 = vsub.f32 %v75, %v776
    %v779 = vlaneseq
    %v780 = vshrl.u32 %v779, 7
    %v781 = vsub.s32 4, %v780
    %v782 = vrot.slane %v773, %v781
    %v783 = vmul.f32 %v749, %v782
    %v784 = vlaneseq
    %v785 = vshrl.u32 %v784, 7
    %v786 = vsub.s32 5, %v785
    %v787 = vrot.slane %v778, %v786
    %v788 = vadd.f32 %v783, %v787
    %v789 = vmax.f32 %v788, 0.0
    %v790 = vpack.c.bf16 %v789, %v789
    %v791 = vld [vmem:[#allocation8] sm:$0xf]
    %v792 = vld [vmem:[#allocation8 + $0x4] sm:$0xf]
    %v793 = vld [vmem:[#allocation8 + $0x8] sm:$0xf]
    %v794 = vld [vmem:[#allocation8 + $0xc] sm:$0xf]
    %v795 = vld [vmem:[#allocation8 + $0x10] sm:$0xf]
    %v796 = vld [vmem:[#allocation8 + $0x14] sm:$0xf]
    %v797 = vld [vmem:[#allocation8 + $0x18] sm:$0xf]
    %v798 = vld [vmem:[#allocation8 + $0x1c] sm:$0xf]
    %v799 = vld [vmem:[#allocation8 + $0x20] sm:$0xf]
    %v800 = vld [vmem:[#allocation8 + $0x24] sm:$0xf]
    %v801 = vld [vmem:[#allocation8 + $0x28] sm:$0xf]
    %v802 = vld [vmem:[#allocation8 + $0x2c] sm:$0xf]
    %v803 = vld [vmem:[#allocation8 + $0x30] sm:$0xf]
    %v804 = vld [vmem:[#allocation8 + $0x34] sm:$0xf]
    %v805 = vld [vmem:[#allocation8 + $0x38] sm:$0xf]
    %v806 = vld [vmem:[#allocation8 + $0x3c] sm:$0xf]
    %v807 = vlaneseq
    %v808 = vshrl.u32 %v807, 7
    %v809 = vsub.s32 6, %v808
    %v810 = vrot.slane %v75, %v809
    %v827 = vunpack.c.l.b16 %v791
    %v828 = vunpack.c.l.b16 %v792
    %v829 = vunpack.c.l.b16 %v793
    %v830 = vunpack.c.l.b16 %v794
    %v831 = vunpack.c.l.b16 %v795
    %v832 = vunpack.c.l.b16 %v796
    %v833 = vunpack.c.l.b16 %v797
    %v834 = vunpack.c.l.b16 %v798
    %v835 = vunpack.c.l.b16 %v799
    %v836 = vunpack.c.l.b16 %v800
    %v837 = vunpack.c.l.b16 %v801
    %v838 = vunpack.c.l.b16 %v802
    %v839 = vunpack.c.l.b16 %v803
    %v840 = vunpack.c.l.b16 %v804
    %v841 = vunpack.c.l.b16 %v805
    %v842 = vunpack.c.l.b16 %v806
    %v843 = vpack.c.b16 %v828, %v827
    %v844 = vpack.c.b16 %v830, %v829
    %v845 = vpack.c.b16 %v832, %v831
    %v846 = vpack.c.b16 %v834, %v833
    %v847 = vpack.c.b16 %v836, %v835
    %v848 = vpack.c.b16 %v838, %v837
    %v849 = vpack.c.b16 %v840, %v839
    %v850 = vpack.c.b16 %v842, %v841
    %859 = vmatprep.subr.bf16.mxu0 0
    %860 = vmatpush1.bf16.msra.mxu0 %v843
    %861 = vmatprep.subr.bf16.mxu0 0
    %862 = vmatpush1.bf16.msra.mxu0 %v844
    %863 = vmatprep.subr.bf16.mxu0 0
    %864 = vmatpush1.bf16.msra.mxu0 %v845
    %865 = vmatprep.subr.bf16.mxu0 0
    %866 = vmatpush1.bf16.msra.mxu0 %v846
    %867 = vmatprep.subr.bf16.mxu0 0
    %868 = vmatpush1.bf16.msra.mxu0 %v847
    %869 = vmatprep.subr.bf16.mxu0 0
    %870 = vmatpush1.bf16.msra.mxu0 %v848
    %871 = vmatprep.subr.bf16.mxu0 0
    %872 = vmatpush1.bf16.msra.mxu0 %v849
    %873 = vmatprep.subr.bf16.mxu0 0
    %874 = vmatpush1.bf16.msra.mxu0 %v850
    %875 = vmatprep.subr.bf16.mxu0 0
    %876 = vmatpush1.bf16.msra.mxu0 0
    %877 = vmatprep.subr.bf16.mxu0 0
    %878 = vmatpush1.bf16.msra.mxu0 0
    %879 = vmatprep.subr.bf16.mxu0 0
    %880 = vmatpush1.bf16.msra.mxu0 0
    %881 = vmatprep.subr.bf16.mxu0 0
    %882 = vmatpush1.bf16.msra.mxu0 0
    %883 = vmatprep.subr.bf16.mxu0 0
    %884 = vmatpush1.bf16.msra.mxu0 0
    %885 = vmatprep.subr.bf16.mxu0 0
    %886 = vmatpush1.bf16.msra.mxu0 0
    %887 = vmatprep.subr.bf16.mxu0 0
    %888 = vmatpush1.bf16.msra.mxu0 0
    %889 = vmatprep.subr.bf16.mxu0 0
    %890 = vmatpush1.bf16.msra.mxu0 0
    %891 = vmatprep.mubr.bf16.mxu0 0
    %892 = vmatmul.mubr.bf16.gmra.mrb[0].mxu0 %v790
    %v893 = vpop.f32.mrb[0].mxu0
    %v894 = vadd.f32 %v810, %v893
    %v895 = vpop.f32.mrb[0].mxu0
    %v896 = vpop.f32.mrb[0].mxu0
    %v897 = vpop.f32.mrb[0].mxu0
    %898 = vdwg.mxu0
    %899 = vst [vmem:[#allocation10] sm:$0xff] %v894
    // Predicated region
    $region38: #{tpu_custom_call.1} parent=1 // pred_check
      _
    $region39: #{tpu_custom_call.1} parent=1 // pred_check_branch
      %901 = sbr.rel (0) target = $region41
    $region40: #{tpu_custom_call.1} parent=1 // pred_region
      %s903 = ssub.s32 128, 128
      %904 = vsyncadd [#allocation4], %s903
      %s906 = sshll.u32 [#allocation10], 4
      %s907 = int_to_ptr.vmem [resolvable:$true] %s906
      %909 = dma.vmem_to_hbm [thread:$0]  %s907, 128, %s5, [#allocation4]
    $region41: #{tpu_custom_call.1} parent=1 // pred_fallthru
      _
    // Predicated region
    $region42: #{tpu_custom_call.1} parent=1 // pred_check
      _
    $region43: #{tpu_custom_call.1} parent=1 // pred_check_branch
      %911 = sbr.rel (0) target = $region45
    $region44: #{tpu_custom_call.1} parent=1 // pred_region
      %912 = dma.done [#allocation4], 128
    $region45: #{tpu_custom_call.1} parent=1 // pred_fallthru
      _
    %913 = vsyncpa [#allocation3], 1
    %914 = vsyncpa [#allocation6], 1
    %915 = vsyncpa [#allocation9], 1
    %916 = vsyncpa [#allocation4], 1

</llo_original>
